<compile_context>
chip_gen: v7x
topology: tpu7x:2x2x1
jax: 0.10.0
libtpu: 0.0.40
codegen_flags: <defaults>
</compile_context>

<pallas_src>
import jax
import jax.numpy as jnp
from jax import lax
from jax.experimental import pallas as pl
from jax.experimental.pallas import tpu as pltpu


def compl_mul1d_kernel(x_ref, wr_ref, wi_ref, or_ref, oi_ref):
    """Per-mode real matmul on the MXU.

    x_ref : (tm, B,     2*Cin)   stacked [xr | xi] along the channel axis
    wr_ref: (tm, 2*Cin, Cout )   stacked [wr ; -wi]
    wi_ref: (tm, 2*Cin, Cout )   stacked [wi ;  wr]
    or_ref/oi_ref: (tm, B, Cout) real / imag parts of the output modes.
    """
    x = x_ref[...]
    wr = wr_ref[...]
    wi = wi_ref[...]
    # Batched matmul: batch dim = mode axis (0), contract 2*Cin.
    dn = (((2,), (1,)), ((0,), (0,)))
    or_ref[...] = lax.dot_general(x, wr, dn, preferred_element_type=jnp.float32)
    oi_ref[...] = lax.dot_general(x, wi, dn, preferred_element_type=jnp.float32)


def _pick_mode_tile(M, per_mode_bytes, budget_bytes):
    """Largest divisor of M whose double-buffered footprint fits the budget."""
    best = 1
    for tm in range(1, M + 1):
        if M % tm == 0 and 2 * tm * per_mode_bytes <= budget_bytes:
            best = tm
    return best


def compl_mul1d_pallas(x_ft, weights):
    """x_ft: complex64 (B, Cin, M);  weights: complex64 (Cin, Cout, M).

    Returns complex64 (B, Cout, M) = einsum('bix,iox->box', x_ft, weights).
    """
    B, Cin, M = x_ft.shape
    Cout = weights.shape[1]

    xr = jnp.real(x_ft).astype(jnp.float32)
    xi = jnp.imag(x_ft).astype(jnp.float32)
    wr = jnp.real(weights).astype(jnp.float32)
    wi = jnp.imag(weights).astype(jnp.float32)

    # (M, B, 2*Cin): real/imag stacked along the contraction axis, lane-dense.
    lhs = jnp.transpose(jnp.concatenate([xr, xi], axis=1), (2, 0, 1))
    # (M, 2*Cin, Cout): rhs for the real / imag output parts.
    rhs_r = jnp.transpose(jnp.concatenate([wr, -wi], axis=0), (2, 0, 1))
    rhs_i = jnp.transpose(jnp.concatenate([wi, wr], axis=0), (2, 0, 1))

    # VMEM footprint of one mode-slice (inputs + outputs), f32 bytes.
    per_mode_bytes = 4 * (B * 2 * Cin + 2 * (2 * Cin) * Cout + 2 * B * Cout)
    # Keep double-buffered working set <= 16 MiB -> safe on v5e/v6e/v7x and
    # leaves room for pipelining on large problems.
    tm = _pick_mode_tile(M, per_mode_bytes, 16 * 1024 * 1024)
    grid = (M // tm,)

    out_r, out_i = pl.pallas_call(
        compl_mul1d_kernel,
        out_shape=(
            jax.ShapeDtypeStruct((M, B, Cout), jnp.float32),
            jax.ShapeDtypeStruct((M, B, Cout), jnp.float32),
        ),
        grid_spec=pl.GridSpec(
            grid=grid,
            in_specs=[
                pl.BlockSpec((tm, B, 2 * Cin), lambda m: (m, 0, 0)),
                pl.BlockSpec((tm, 2 * Cin, Cout), lambda m: (m, 0, 0)),
                pl.BlockSpec((tm, 2 * Cin, Cout), lambda m: (m, 0, 0)),
            ],
            out_specs=(
                pl.BlockSpec((tm, B, Cout), lambda m: (m, 0, 0)),
                pl.BlockSpec((tm, B, Cout), lambda m: (m, 0, 0)),
            ),
        ),
        compiler_params=pltpu.CompilerParams(
            dimension_semantics=("parallel",),
            vmem_limit_bytes=48 * 1024 * 1024,
        ),
    )(lhs, rhs_r, rhs_i)

    out = lax.complex(out_r, out_i)          # (M, B, Cout)
    return jnp.transpose(out, (1, 2, 0))     # (B, Cout, M)


def spectral_conv1d(x, weights, modes1):
    """x: float32 (B, Cin, N);  weights: complex64 (Cin, Cout, modes1)."""
    B, Cin, N = x.shape
    x_ft = jnp.fft.rfft(x, axis=2)                                # (B, Cin, N//2+1)
    out_modes = compl_mul1d_pallas(x_ft[:, :, :modes1], weights)  # (B, Cout, modes1)
    # Pad the unused high modes with zeros (no zeros+scatter round trip).
    pad_hi = N // 2 + 1 - modes1
    out_ft = jnp.pad(out_modes, ((0, 0), (0, 0), (0, pad_hi)))
    return jnp.fft.irfft(out_ft, n=N, axis=2)                     # (B, Cout, N)


if __name__ == "__main__":
    # Small shapes consistent with the module.  NOTE: the reference PyTorch
    # forward only type-checks when in_channels == out_channels (out_ft is
    # allocated with in_channels), so we match that here.
    B, Cin, Cout, N, modes1 = 2, 4, 4, 16, 8

    key = jax.random.PRNGKey(0)
    kx, kwr, kwi = jax.random.split(key, 3)

    x = jax.random.normal(kx, (B, Cin, N), dtype=jnp.float32)

    # weights1 = scale * rand(in, out, modes, dtype=cfloat); rand is U[0,1)
    scale = 1.0 / (Cin * Cout)
    w_r = scale * jax.random.uniform(kwr, (Cin, Cout, modes1), dtype=jnp.float32)
    w_i = scale * jax.random.uniform(kwi, (Cin, Cout, modes1), dtype=jnp.float32)
    weights = (w_r + 1j * w_i).astype(jnp.complex64)

    y = jax.block_until_ready(spectral_conv1d(x, weights, modes1))

    # Pure-JAX reference of the same forward (einsum for compl_mul1d).
    x_ft = jnp.fft.rfft(x, axis=2)
    ref_modes = jnp.einsum("bix,iox->box", x_ft[:, :, :modes1], weights)
    ref_ft = jnp.zeros((B, Cout, N // 2 + 1), dtype=jnp.complex64)
    ref_ft = ref_ft.at[:, :, :modes1].set(ref_modes)
    y_ref = jnp.fft.irfft(ref_ft, n=N, axis=2)

    assert y.shape == (B, Cout, N)
    assert jnp.allclose(y, y_ref, atol=1e-5, rtol=1e-5)
    print("KERNEL_OK")
</pallas_src>

<mosaic_0001>
module attributes {stable_mosaic.version = 11 : i64} {
  func.func @compl_mul1d_kernel(%arg0: i32, %arg1: memref<8x2x8xf32, #tpu.memory_space<vmem>>, %arg2: memref<8x8x4xf32, #tpu.memory_space<vmem>>, %arg3: memref<8x8x4xf32, #tpu.memory_space<vmem>>, %arg4: memref<8x2x4xf32, #tpu.memory_space<vmem>>, %arg5: memref<8x2x4xf32, #tpu.memory_space<vmem>>) attributes {dimension_semantics = [#tpu.dimension_semantics<parallel>], iteration_bounds = array<i64: 1>, scalar_prefetch = 0 : i64, scratch_operands = 0 : i64, tpu.core_type = #tpu.core_type<tc>, window_params = [{transform_indices = @transform_0, window_bounds = array<i64: 8, 2, 8>}, {transform_indices = @transform_1, window_bounds = array<i64: 8, 8, 4>}, {transform_indices = @transform_2, window_bounds = array<i64: 8, 8, 4>}, {transform_indices = @transform_3, window_bounds = array<i64: 8, 2, 4>}, {transform_indices = @transform_4, window_bounds = array<i64: 8, 2, 4>}]} {
    %c0 = arith.constant 0 : index
    %c0_0 = arith.constant 0 : index
    %c0_1 = arith.constant 0 : index
    %0 = vector.load %arg1[%c0, %c0_0, %c0_1] : memref<8x2x8xf32, #tpu.memory_space<vmem>>, vector<8x2x8xf32>
    %c0_2 = arith.constant 0 : index
    %c0_3 = arith.constant 0 : index
    %c0_4 = arith.constant 0 : index
    %1 = vector.load %arg2[%c0_2, %c0_3, %c0_4] : memref<8x8x4xf32, #tpu.memory_space<vmem>>, vector<8x8x4xf32>
    %c0_5 = arith.constant 0 : index
    %c0_6 = arith.constant 0 : index
    %c0_7 = arith.constant 0 : index
    %2 = vector.load %arg3[%c0_5, %c0_6, %c0_7] : memref<8x8x4xf32, #tpu.memory_space<vmem>>, vector<8x8x4xf32>
    %cst = arith.constant dense<0.000000e+00> : vector<8x2x4xf32>
    %3 = tpu.matmul %0, %1, %cst {dimension_numbers = #tpu.dot_dimension_numbers<[2], [1], [1], [2], [0, 0, 0, 1, 1, 2], [0], [0]>} : vector<8x2x8xf32>, vector<8x8x4xf32>, vector<8x2x4xf32> -> vector<8x2x4xf32>
    %c0_8 = arith.constant 0 : index
    %c0_9 = arith.constant 0 : index
    %c0_10 = arith.constant 0 : index
    %4 = vector.load %arg4[%c0_8, %c0_9, %c0_10] : memref<8x2x4xf32, #tpu.memory_space<vmem>>, vector<8x2x4xf32>
    tpu.vector_store %arg4[%c0_8, %c0_9, %c0_10], %3 {strides = array<i32>} : memref<8x2x4xf32, #tpu.memory_space<vmem>>, vector<8x2x4xf32>,
    %cst_11 = arith.constant dense<0.000000e+00> : vector<8x2x4xf32>
    %5 = tpu.matmul %0, %2, %cst_11 {dimension_numbers = #tpu.dot_dimension_numbers<[2], [1], [1], [2], [0, 0, 0, 1, 1, 2], [0], [0]>} : vector<8x2x8xf32>, vector<8x8x4xf32>, vector<8x2x4xf32> -> vector<8x2x4xf32>
    %c0_12 = arith.constant 0 : index
    %c0_13 = arith.constant 0 : index
    %c0_14 = arith.constant 0 : index
    %6 = vector.load %arg5[%c0_12, %c0_13, %c0_14] : memref<8x2x4xf32, #tpu.memory_space<vmem>>, vector<8x2x4xf32>
    tpu.vector_store %arg5[%c0_12, %c0_13, %c0_14], %5 {strides = array<i32>} : memref<8x2x4xf32, #tpu.memory_space<vmem>>, vector<8x2x4xf32>,
    return
  }
  func.func @transform_0(%arg0: i32) -> (i32, i32, i32) {
    %c0_i32 = arith.constant 0 : i32
    %c0_i32_0 = arith.constant 0 : i32
    %c0_i32_1 = arith.constant 0 : i32
    return %arg0, %c0_i32, %c0_i32_0 : i32, i32, i32
  }
  func.func @transform_1(%arg0: i32) -> (i32, i32, i32) {
    %c0_i32 = arith.constant 0 : i32
    %c0_i32_0 = arith.constant 0 : i32
    %c0_i32_1 = arith.constant 0 : i32
    return %arg0, %c0_i32, %c0_i32_0 : i32, i32, i32
  }
  func.func @transform_2(%arg0: i32) -> (i32, i32, i32) {
    %c0_i32 = arith.constant 0 : i32
    %c0_i32_0 = arith.constant 0 : i32
    %c0_i32_1 = arith.constant 0 : i32
    return %arg0, %c0_i32, %c0_i32_0 : i32, i32, i32
  }
  func.func @transform_3(%arg0: i32) -> (i32, i32, i32) {
    %c0_i32 = arith.constant 0 : i32
    %c0_i32_0 = arith.constant 0 : i32
    %c0_i32_1 = arith.constant 0 : i32
    return %arg0, %c0_i32, %c0_i32_0 : i32, i32, i32
  }
  func.func @transform_4(%arg0: i32) -> (i32, i32, i32) {
    %c0_i32 = arith.constant 0 : i32
    %c0_i32_0 = arith.constant 0 : i32
    %c0_i32_1 = arith.constant 0 : i32
    return %arg0, %c0_i32, %c0_i32_0 : i32, i32, i32
  }
}

</mosaic_0001>

<llo_original>
// kernel: tpu_custom_call.1
$region0: #{tpu_custom_call.1}
  #allocation0 [shape = 'u32[]', space=smem, size = 0x4, offset = 0x4, fixed_abs, tag = 'smem constant byte address 0x4 - core index']
  #allocation1 [shape = 'u32[144,128]{1,0:T(1,128)}', space=vmem, size = 0x12000, scoped, tag = 'internal scratch']
  %s0 = inlined_call_operand.vmem [shape: f32[8,2,8], index: 0, kind: input, shape index: {}]
  %s1 = inlined_call_operand.vmem [shape: f32[8,8,4], index: 1, kind: input, shape index: {}]
  %s2 = inlined_call_operand.vmem [shape: f32[8,8,4], index: 2, kind: input, shape index: {}]
  %s3 = inlined_call_operand.vmem [shape: f32[8,2,4], index: 3, kind: output, shape index: {0}]
  %s4 = inlined_call_operand.vmem [shape: f32[8,2,4], index: 4, kind: output, shape index: {1}]
  %5 = xla_tuple %s3, %s4
  %s6 = sld [smem:[#allocation0]]
  $region30: #{tpu_custom_call.1} parent=0
    _
  %s8 = ssub.s32 1, %s6
  %s9 = scalar_select 0, %s8, %s6
  // Predicated region
  $region2: #{tpu_custom_call.1} parent=0 // pred_check
    _
  $region3: #{tpu_custom_call.1} parent=0 // pred_check_branch
    %11 = sbr.rel (0) target = $region5
  $region4: #{tpu_custom_call.1} parent=0 // pred_region
    _
  $region5: #{tpu_custom_call.1} parent=0 // pred_fallthru
    _
  // Predicated region
  $region6: #{tpu_custom_call.1} parent=0 // pred_check
    _
  $region7: #{tpu_custom_call.1} parent=0 // pred_check_branch
    %13 = sbr.rel (0) target = $region9
  $region8: #{tpu_custom_call.1} parent=0 // pred_region
    _
  $region9: #{tpu_custom_call.1} parent=0 // pred_fallthru
    _
  // Predicated region
  $region10: #{tpu_custom_call.1} parent=0 // pred_check
    _
  $region11: #{tpu_custom_call.1} parent=0 // pred_check_branch
    %15 = sbr.rel (0) target = $region13
  $region12: #{tpu_custom_call.1} parent=0 // pred_region
    _
  $region13: #{tpu_custom_call.1} parent=0 // pred_fallthru
    _
  %v16 = vld [vmem:[%s0] sm:$0x3]
  %v17 = vld [vmem:[%s0 + $0x2] sm:$0x3]
  %v18 = vld [vmem:[%s0 + $0x4] sm:$0x3]
  %v19 = vld [vmem:[%s0 + $0x6] sm:$0x3]
  %v20 = vld [vmem:[%s0 + $0x8] sm:$0x3]
  %v21 = vld [vmem:[%s0 + $0xa] sm:$0x3]
  %v22 = vld [vmem:[%s0 + $0xc] sm:$0x3]
  %v23 = vld [vmem:[%s0 + $0xe] sm:$0x3]
  %v24 = vld [vmem:[%s1] sm:$0xff]
  %v25 = vld [vmem:[%s1 + $0x8] sm:$0xff]
  %v26 = vld [vmem:[%s1 + $0x10] sm:$0xff]
  %v27 = vld [vmem:[%s1 + $0x18] sm:$0xff]
  %v28 = vld [vmem:[%s1 + $0x20] sm:$0xff]
  %v29 = vld [vmem:[%s1 + $0x28] sm:$0xff]
  %v30 = vld [vmem:[%s1 + $0x30] sm:$0xff]
  %v31 = vld [vmem:[%s1 + $0x38] sm:$0xff]
  %v32 = vld [vmem:[%s2] sm:$0xff]
  %v33 = vld [vmem:[%s2 + $0x8] sm:$0xff]
  %v34 = vld [vmem:[%s2 + $0x10] sm:$0xff]
  %v35 = vld [vmem:[%s2 + $0x18] sm:$0xff]
  %v36 = vld [vmem:[%s2 + $0x20] sm:$0xff]
  %v37 = vld [vmem:[%s2 + $0x28] sm:$0xff]
  %v38 = vld [vmem:[%s2 + $0x30] sm:$0xff]
  %v39 = vld [vmem:[%s2 + $0x38] sm:$0xff]
  %vm40 = vcmask 64512
  %v42 = vsel %vm40, %v16, 0
  %44 = vmatprep.subr.mxu0 0.0
  %45 = vmatpush1.msra.mxu0 %v24
  %46 = vmatprep.subr.mxu0 0.0
  %47 = vmatpush1.msra.mxu0 0.0
  %48 = vmatprep.subr.mxu0 0.0
  %49 = vmatpush1.msra.mxu0 0.0
  %50 = vmatprep.subr.mxu0 0.0
  %51 = vmatpush1.msra.mxu0 0.0
  %52 = vmatprep.subr.mxu0 0.0
  %53 = vmatpush1.msra.mxu0 0.0
  %54 = vmatprep.subr.mxu0 0.0
  %55 = vmatpush1.msra.mxu0 0.0
  %56 = vmatprep.subr.mxu0 0.0
  %57 = vmatpush1.msra.mxu0 0.0
  %58 = vmatprep.subr.mxu0 0.0
  %59 = vmatpush1.msra.mxu0 0.0
  %60 = vmatprep.subr.mxu0 0.0
  %61 = vmatpush1.msra.mxu0 0.0
  %62 = vmatprep.subr.mxu0 0.0
  %63 = vmatpush1.msra.mxu0 0.0
  %64 = vmatprep.subr.mxu0 0.0
  %65 = vmatpush1.msra.mxu0 0.0
  %66 = vmatprep.subr.mxu0 0.0
  %67 = vmatpush1.msra.mxu0 0.0
  %68 = vmatprep.subr.mxu0 0.0
  %69 = vmatpush1.msra.mxu0 0.0
  %70 = vmatprep.subr.mxu0 0.0
  %71 = vmatpush1.msra.mxu0 0.0
  %72 = vmatprep.subr.mxu0 0.0
  %73 = vmatpush1.msra.mxu0 0.0
  %74 = vmatprep.subr.mxu0 0.0
  %75 = vmatpush1.msra.mxu0 0.0
  %76 = vmatprep.subr.mxu0 0.0
  %77 = vmatpush1.msra.mxu0 0.0
  %78 = vmatprep.subr.mxu0 0.0
  %79 = vmatpush1.msra.mxu0 0.0
  %80 = vmatprep.subr.mxu0 0.0
  %81 = vmatpush1.msra.mxu0 0.0
  %82 = vmatprep.subr.mxu0 0.0
  %83 = vmatpush1.msra.mxu0 0.0
  %84 = vmatprep.subr.mxu0 0.0
  %85 = vmatpush1.msra.mxu0 0.0
  %86 = vmatprep.subr.mxu0 0.0
  %87 = vmatpush1.msra.mxu0 0.0
  %88 = vmatprep.subr.mxu0 0.0
  %89 = vmatpush1.msra.mxu0 0.0
  %90 = vmatprep.subr.mxu0 0.0
  %91 = vmatpush1.msra.mxu0 0.0
  %92 = vmatprep.subr.mxu0 0.0
  %93 = vmatpush1.msra.mxu0 0.0
  %94 = vmatprep.subr.mxu0 0.0
  %95 = vmatpush1.msra.mxu0 0.0
  %96 = vmatprep.subr.mxu0 0.0
  %97 = vmatpush1.msra.mxu0 0.0
  %98 = vmatprep.subr.mxu0 0.0
  %99 = vmatpush1.msra.mxu0 0.0
  %100 = vmatprep.subr.mxu0 0.0
  %101 = vmatpush1.msra.mxu0 0.0
  %102 = vmatprep.subr.mxu0 0.0
  %103 = vmatpush1.msra.mxu0 0.0
  %104 = vmatprep.subr.mxu0 0.0
  %105 = vmatpush1.msra.mxu0 0.0
  %106 = vmatprep.subr.mxu0 0.0
  %107 = vmatpush1.msra.mxu0 0.0
  %108 = vmatprep.mubr.f32.mxu0 0.0
  %109 = vmatmul.mubr.f32.gmra.mrb[0].mxu0 %v42
  %v110 = vpop.f32.mrb[0].mxu0
  %v111 = vadd.f32 0.0, %v110
  %v112 = vpop.f32.mrb[0].mxu0
  %113 = vdwg.mxu0
  %v115 = vsel %vm40, %v17, 0
  %117 = vmatprep.subr.mxu0 0.0
  %118 = vmatpush1.msra.mxu0 %v25
  %119 = vmatprep.subr.mxu0 0.0
  %120 = vmatpush1.msra.mxu0 0.0
  %121 = vmatprep.subr.mxu0 0.0
  %122 = vmatpush1.msra.mxu0 0.0
  %123 = vmatprep.subr.mxu0 0.0
  %124 = vmatpush1.msra.mxu0 0.0
  %125 = vmatprep.subr.mxu0 0.0
  %126 = vmatpush1.msra.mxu0 0.0
  %127 = vmatprep.subr.mxu0 0.0
  %128 = vmatpush1.msra.mxu0 0.0
  %129 = vmatprep.subr.mxu0 0.0
  %130 = vmatpush1.msra.mxu0 0.0
  %131 = vmatprep.subr.mxu0 0.0
  %132 = vmatpush1.msra.mxu0 0.0
  %133 = vmatprep.subr.mxu0 0.0
  %134 = vmatpush1.msra.mxu0 0.0
  %135 = vmatprep.subr.mxu0 0.0
  %136 = vmatpush1.msra.mxu0 0.0
  %137 = vmatprep.subr.mxu0 0.0
  %138 = vmatpush1.msra.mxu0 0.0
  %139 = vmatprep.subr.mxu0 0.0
  %140 = vmatpush1.msra.mxu0 0.0
  %141 = vmatprep.subr.mxu0 0.0
  %142 = vmatpush1.msra.mxu0 0.0
  %143 = vmatprep.subr.mxu0 0.0
  %144 = vmatpush1.msra.mxu0 0.0
  %145 = vmatprep.subr.mxu0 0.0
  %146 = vmatpush1.msra.mxu0 0.0
  %147 = vmatprep.subr.mxu0 0.0
  %148 = vmatpush1.msra.mxu0 0.0
  %149 = vmatprep.subr.mxu0 0.0
  %150 = vmatpush1.msra.mxu0 0.0
  %151 = vmatprep.subr.mxu0 0.0
  %152 = vmatpush1.msra.mxu0 0.0
  %153 = vmatprep.subr.mxu0 0.0
  %154 = vmatpush1.msra.mxu0 0.0
  %155 = vmatprep.subr.mxu0 0.0
  %156 = vmatpush1.msra.mxu0 0.0
  %157 = vmatprep.subr.mxu0 0.0
  %158 = vmatpush1.msra.mxu0 0.0
  %159 = vmatprep.subr.mxu0 0.0
  %160 = vmatpush1.msra.mxu0 0.0
  %161 = vmatprep.subr.mxu0 0.0
  %162 = vmatpush1.msra.mxu0 0.0
  %163 = vmatprep.subr.mxu0 0.0
  %164 = vmatpush1.msra.mxu0 0.0
  %165 = vmatprep.subr.mxu0 0.0
  %166 = vmatpush1.msra.mxu0 0.0
  %167 = vmatprep.subr.mxu0 0.0
  %168 = vmatpush1.msra.mxu0 0.0
  %169 = vmatprep.subr.mxu0 0.0
  %170 = vmatpush1.msra.mxu0 0.0
  %171 = vmatprep.subr.mxu0 0.0
  %172 = vmatpush1.msra.mxu0 0.0
  %173 = vmatprep.subr.mxu0 0.0
  %174 = vmatpush1.msra.mxu0 0.0
  %175 = vmatprep.subr.mxu0 0.0
  %176 = vmatpush1.msra.mxu0 0.0
  %177 = vmatprep.subr.mxu0 0.0
  %178 = vmatpush1.msra.mxu0 0.0
  %179 = vmatprep.subr.mxu0 0.0
  %180 = vmatpush1.msra.mxu0 0.0
  %181 = vmatprep.mubr.f32.mxu0 0.0
  %182 = vmatmul.mubr.f32.gmra.mrb[0].mxu0 %v115
  %v183 = vpop.f32.mrb[0].mxu0
  %v184 = vadd.f32 0.0, %v183
  %v185 = vpop.f32.mrb[0].mxu0
  %186 = vdwg.mxu0
  %v188 = vsel %vm40, %v18, 0
  %190 = vmatprep.subr.mxu0 0.0
  %191 = vmatpush1.msra.mxu0 %v26
  %192 = vmatprep.subr.mxu0 0.0
  %193 = vmatpush1.msra.mxu0 0.0
  %194 = vmatprep.subr.mxu0 0.0
  %195 = vmatpush1.msra.mxu0 0.0
  %196 = vmatprep.subr.mxu0 0.0
  %197 = vmatpush1.msra.mxu0 0.0
  %198 = vmatprep.subr.mxu0 0.0
  %199 = vmatpush1.msra.mxu0 0.0
  %200 = vmatprep.subr.mxu0 0.0
  %201 = vmatpush1.msra.mxu0 0.0
  %202 = vmatprep.subr.mxu0 0.0
  %203 = vmatpush1.msra.mxu0 0.0
  %204 = vmatprep.subr.mxu0 0.0
  %205 = vmatpush1.msra.mxu0 0.0
  %206 = vmatprep.subr.mxu0 0.0
  %207 = vmatpush1.msra.mxu0 0.0
  %208 = vmatprep.subr.mxu0 0.0
  %209 = vmatpush1.msra.mxu0 0.0
  %210 = vmatprep.subr.mxu0 0.0
  %211 = vmatpush1.msra.mxu0 0.0
  %212 = vmatprep.subr.mxu0 0.0
  %213 = vmatpush1.msra.mxu0 0.0
  %214 = vmatprep.subr.mxu0 0.0
  %215 = vmatpush1.msra.mxu0 0.0
  %216 = vmatprep.subr.mxu0 0.0
  %217 = vmatpush1.msra.mxu0 0.0
  %218 = vmatprep.subr.mxu0 0.0
  %219 = vmatpush1.msra.mxu0 0.0
  %220 = vmatprep.subr.mxu0 0.0
  %221 = vmatpush1.msra.mxu0 0.0
  %222 = vmatprep.subr.mxu0 0.0
  %223 = vmatpush1.msra.mxu0 0.0
  %224 = vmatprep.subr.mxu0 0.0
  %225 = vmatpush1.msra.mxu0 0.0
  %226 = vmatprep.subr.mxu0 0.0
  %227 = vmatpush1.msra.mxu0 0.0
  %228 = vmatprep.subr.mxu0 0.0
  %229 = vmatpush1.msra.mxu0 0.0
  %230 = vmatprep.subr.mxu0 0.0
  %231 = vmatpush1.msra.mxu0 0.0
  %232 = vmatprep.subr.mxu0 0.0
  %233 = vmatpush1.msra.mxu0 0.0
  %234 = vmatprep.subr.mxu0 0.0
  %235 = vmatpush1.msra.mxu0 0.0
  %236 = vmatprep.subr.mxu0 0.0
  %237 = vmatpush1.msra.mxu0 0.0
  %238 = vmatprep.subr.mxu0 0.0
  %239 = vmatpush1.msra.mxu0 0.0
  %240 = vmatprep.subr.mxu0 0.0
  %241 = vmatpush1.msra.mxu0 0.0
  %242 = vmatprep.subr.mxu0 0.0
  %243 = vmatpush1.msra.mxu0 0.0
  %244 = vmatprep.subr.mxu0 0.0
  %245 = vmatpush1.msra.mxu0 0.0
  %246 = vmatprep.subr.mxu0 0.0
  %247 = vmatpush1.msra.mxu0 0.0
  %248 = vmatprep.subr.mxu0 0.0
  %249 = vmatpush1.msra.mxu0 0.0
  %250 = vmatprep.subr.mxu0 0.0
  %251 = vmatpush1.msra.mxu0 0.0
  %252 = vmatprep.subr.mxu0 0.0
  %253 = vmatpush1.msra.mxu0 0.0
  %254 = vmatprep.mubr.f32.mxu0 0.0
  %255 = vmatmul.mubr.f32.gmra.mrb[0].mxu0 %v188
  %v256 = vpop.f32.mrb[0].mxu0
  %v257 = vadd.f32 0.0, %v256
  %v258 = vpop.f32.mrb[0].mxu0
  %259 = vdwg.mxu0
  %v261 = vsel %vm40, %v19, 0
  %263 = vmatprep.subr.mxu0 0.0
  %264 = vmatpush1.msra.mxu0 %v27
  %265 = vmatprep.subr.mxu0 0.0
  %266 = vmatpush1.msra.mxu0 0.0
  %267 = vmatprep.subr.mxu0 0.0
  %268 = vmatpush1.msra.mxu0 0.0
  %269 = vmatprep.subr.mxu0 0.0
  %270 = vmatpush1.msra.mxu0 0.0
  %271 = vmatprep.subr.mxu0 0.0
  %272 = vmatpush1.msra.mxu0 0.0
  %273 = vmatprep.subr.mxu0 0.0
  %274 = vmatpush1.msra.mxu0 0.0
  %275 = vmatprep.subr.mxu0 0.0
  %276 = vmatpush1.msra.mxu0 0.0
  %277 = vmatprep.subr.mxu0 0.0
  %278 = vmatpush1.msra.mxu0 0.0
  %279 = vmatprep.subr.mxu0 0.0
  %280 = vmatpush1.msra.mxu0 0.0
  %281 = vmatprep.subr.mxu0 0.0
  %282 = vmatpush1.msra.mxu0 0.0
  %283 = vmatprep.subr.mxu0 0.0
  %284 = vmatpush1.msra.mxu0 0.0
  %285 = vmatprep.subr.mxu0 0.0
  %286 = vmatpush1.msra.mxu0 0.0
  %287 = vmatprep.subr.mxu0 0.0
  %288 = vmatpush1.msra.mxu0 0.0
  %289 = vmatprep.subr.mxu0 0.0
  %290 = vmatpush1.msra.mxu0 0.0
  %291 = vmatprep.subr.mxu0 0.0
  %292 = vmatpush1.msra.mxu0 0.0
  %293 = vmatprep.subr.mxu0 0.0
  %294 = vmatpush1.msra.mxu0 0.0
  %295 = vmatprep.subr.mxu0 0.0
  %296 = vmatpush1.msra.mxu0 0.0
  %297 = vmatprep.subr.mxu0 0.0
  %298 = vmatpush1.msra.mxu0 0.0
  %299 = vmatprep.subr.mxu0 0.0
  %300 = vmatpush1.msra.mxu0 0.0
  %301 = vmatprep.subr.mxu0 0.0
  %302 = vmatpush1.msra.mxu0 0.0
  %303 = vmatprep.subr.mxu0 0.0
  %304 = vmatpush1.msra.mxu0 0.0
  %305 = vmatprep.subr.mxu0 0.0
  %306 = vmatpush1.msra.mxu0 0.0
  %307 = vmatprep.subr.mxu0 0.0
  %308 = vmatpush1.msra.mxu0 0.0
  %309 = vmatprep.subr.mxu0 0.0
  %310 = vmatpush1.msra.mxu0 0.0
  %311 = vmatprep.subr.mxu0 0.0
  %312 = vmatpush1.msra.mxu0 0.0
  %313 = vmatprep.subr.mxu0 0.0
  %314 = vmatpush1.msra.mxu0 0.0
  %315 = vmatprep.subr.mxu0 0.0
  %316 = vmatpush1.msra.mxu0 0.0
  %317 = vmatprep.subr.mxu0 0.0
  %318 = vmatpush1.msra.mxu0 0.0
  %319 = vmatprep.subr.mxu0 0.0
  %320 = vmatpush1.msra.mxu0 0.0
  %321 = vmatprep.subr.mxu0 0.0
  %322 = vmatpush1.msra.mxu0 0.0
  %323 = vmatprep.subr.mxu0 0.0
  %324 = vmatpush1.msra.mxu0 0.0
  %325 = vmatprep.subr.mxu0 0.0
  %326 = vmatpush1.msra.mxu0 0.0
  %327 = vmatprep.mubr.f32.mxu0 0.0
  %328 = vmatmul.mubr.f32.gmra.mrb[0].mxu0 %v261
  %v329 = vpop.f32.mrb[0].mxu0
  %v330 = vadd.f32 0.0, %v329
  %v331 = vpop.f32.mrb[0].mxu0
  %332 = vdwg.mxu0
  %v334 = vsel %vm40, %v20, 0
  %336 = vmatprep.subr.mxu0 0.0
  %337 = vmatpush1.msra.mxu0 %v28
  %338 = vmatprep.subr.mxu0 0.0
  %339 = vmatpush1.msra.mxu0 0.0
  %340 = vmatprep.subr.mxu0 0.0
  %341 = vmatpush1.msra.mxu0 0.0
  %342 = vmatprep.subr.mxu0 0.0
  %343 = vmatpush1.msra.mxu0 0.0
  %344 = vmatprep.subr.mxu0 0.0
  %345 = vmatpush1.msra.mxu0 0.0
  %346 = vmatprep.subr.mxu0 0.0
  %347 = vmatpush1.msra.mxu0 0.0
  %348 = vmatprep.subr.mxu0 0.0
  %349 = vmatpush1.msra.mxu0 0.0
  %350 = vmatprep.subr.mxu0 0.0
  %351 = vmatpush1.msra.mxu0 0.0
  %352 = vmatprep.subr.mxu0 0.0
  %353 = vmatpush1.msra.mxu0 0.0
  %354 = vmatprep.subr.mxu0 0.0
  %355 = vmatpush1.msra.mxu0 0.0
  %356 = vmatprep.subr.mxu0 0.0
  %357 = vmatpush1.msra.mxu0 0.0
  %358 = vmatprep.subr.mxu0 0.0
  %359 = vmatpush1.msra.mxu0 0.0
  %360 = vmatprep.subr.mxu0 0.0
  %361 = vmatpush1.msra.mxu0 0.0
  %362 = vmatprep.subr.mxu0 0.0
  %363 = vmatpush1.msra.mxu0 0.0
  %364 = vmatprep.subr.mxu0 0.0
  %365 = vmatpush1.msra.mxu0 0.0
  %366 = vmatprep.subr.mxu0 0.0
  %367 = vmatpush1.msra.mxu0 0.0
  %368 = vmatprep.subr.mxu0 0.0
  %369 = vmatpush1.msra.mxu0 0.0
  %370 = vmatprep.subr.mxu0 0.0
  %371 = vmatpush1.msra.mxu0 0.0
  %372 = vmatprep.subr.mxu0 0.0
  %373 = vmatpush1.msra.mxu0 0.0
  %374 = vmatprep.subr.mxu0 0.0
  %375 = vmatpush1.msra.mxu0 0.0
  %376 = vmatprep.subr.mxu0 0.0
  %377 = vmatpush1.msra.mxu0 0.0
  %378 = vmatprep.subr.mxu0 0.0
  %379 = vmatpush1.msra.mxu0 0.0
  %380 = vmatprep.subr.mxu0 0.0
  %381 = vmatpush1.msra.mxu0 0.0
  %382 = vmatprep.subr.mxu0 0.0
  %383 = vmatpush1.msra.mxu0 0.0
  %384 = vmatprep.subr.mxu0 0.0
  %385 = vmatpush1.msra.mxu0 0.0
  %386 = vmatprep.subr.mxu0 0.0
  %387 = vmatpush1.msra.mxu0 0.0
  %388 = vmatprep.subr.mxu0 0.0
  %389 = vmatpush1.msra.mxu0 0.0
  %390 = vmatprep.subr.mxu0 0.0
  %391 = vmatpush1.msra.mxu0 0.0
  %392 = vmatprep.subr.mxu0 0.0
  %393 = vmatpush1.msra.mxu0 0.0
  %394 = vmatprep.subr.mxu0 0.0
  %395 = vmatpush1.msra.mxu0 0.0
  %396 = vmatprep.subr.mxu0 0.0
  %397 = vmatpush1.msra.mxu0 0.0
  %398 = vmatprep.subr.mxu0 0.0
  %399 = vmatpush1.msra.mxu0 0.0
  %400 = vmatprep.mubr.f32.mxu0 0.0
  %401 = vmatmul.mubr.f32.gmra.mrb[0].mxu0 %v334
  %v402 = vpop.f32.mrb[0].mxu0
  %v403 = vadd.f32 0.0, %v402
  %v404 = vpop.f32.mrb[0].mxu0
  %405 = vdwg.mxu0
  %v407 = vsel %vm40, %v21, 0
  %409 = vmatprep.subr.mxu0 0.0
  %410 = vmatpush1.msra.mxu0 %v29
  %411 = vmatprep.subr.mxu0 0.0
  %412 = vmatpush1.msra.mxu0 0.0
  %413 = vmatprep.subr.mxu0 0.0
  %414 = vmatpush1.msra.mxu0 0.0
  %415 = vmatprep.subr.mxu0 0.0
  %416 = vmatpush1.msra.mxu0 0.0
  %417 = vmatprep.subr.mxu0 0.0
  %418 = vmatpush1.msra.mxu0 0.0
  %419 = vmatprep.subr.mxu0 0.0
  %420 = vmatpush1.msra.mxu0 0.0
  %421 = vmatprep.subr.mxu0 0.0
  %422 = vmatpush1.msra.mxu0 0.0
  %423 = vmatprep.subr.mxu0 0.0
  %424 = vmatpush1.msra.mxu0 0.0
  %425 = vmatprep.subr.mxu0 0.0
  %426 = vmatpush1.msra.mxu0 0.0
  %427 = vmatprep.subr.mxu0 0.0
  %428 = vmatpush1.msra.mxu0 0.0
  %429 = vmatprep.subr.mxu0 0.0
  %430 = vmatpush1.msra.mxu0 0.0
  %431 = vmatprep.subr.mxu0 0.0
  %432 = vmatpush1.msra.mxu0 0.0
  %433 = vmatprep.subr.mxu0 0.0
  %434 = vmatpush1.msra.mxu0 0.0
  %435 = vmatprep.subr.mxu0 0.0
  %436 = vmatpush1.msra.mxu0 0.0
  %437 = vmatprep.subr.mxu0 0.0
  %438 = vmatpush1.msra.mxu0 0.0
  %439 = vmatprep.subr.mxu0 0.0
  %440 = vmatpush1.msra.mxu0 0.0
  %441 = vmatprep.subr.mxu0 0.0
  %442 = vmatpush1.msra.mxu0 0.0
  %443 = vmatprep.subr.mxu0 0.0
  %444 = vmatpush1.msra.mxu0 0.0
  %445 = vmatprep.subr.mxu0 0.0
  %446 = vmatpush1.msra.mxu0 0.0
  %447 = vmatprep.subr.mxu0 0.0
  %448 = vmatpush1.msra.mxu0 0.0
  %449 = vmatprep.subr.mxu0 0.0
  %450 = vmatpush1.msra.mxu0 0.0
  %451 = vmatprep.subr.mxu0 0.0
  %452 = vmatpush1.msra.mxu0 0.0
  %453 = vmatprep.subr.mxu0 0.0
  %454 = vmatpush1.msra.mxu0 0.0
  %455 = vmatprep.subr.mxu0 0.0
  %456 = vmatpush1.msra.mxu0 0.0
  %457 = vmatprep.subr.mxu0 0.0
  %458 = vmatpush1.msra.mxu0 0.0
  %459 = vmatprep.subr.mxu0 0.0
  %460 = vmatpush1.msra.mxu0 0.0
  %461 = vmatprep.subr.mxu0 0.0
  %462 = vmatpush1.msra.mxu0 0.0
  %463 = vmatprep.subr.mxu0 0.0
  %464 = vmatpush1.msra.mxu0 0.0
  %465 = vmatprep.subr.mxu0 0.0
  %466 = vmatpush1.msra.mxu0 0.0
  %467 = vmatprep.subr.mxu0 0.0
  %468 = vmatpush1.msra.mxu0 0.0
  %469 = vmatprep.subr.mxu0 0.0
  %470 = vmatpush1.msra.mxu0 0.0
  %471 = vmatprep.subr.mxu0 0.0
  %472 = vmatpush1.msra.mxu0 0.0
  %473 = vmatprep.mubr.f32.mxu0 0.0
  %474 = vmatmul.mubr.f32.gmra.mrb[0].mxu0 %v407
  %v475 = vpop.f32.mrb[0].mxu0
  %v476 = vadd.f32 0.0, %v475
  %v477 = vpop.f32.mrb[0].mxu0
  %478 = vdwg.mxu0
  %v480 = vsel %vm40, %v22, 0
  %482 = vmatprep.subr.mxu0 0.0
  %483 = vmatpush1.msra.mxu0 %v30
  %484 = vmatprep.subr.mxu0 0.0
  %485 = vmatpush1.msra.mxu0 0.0
  %486 = vmatprep.subr.mxu0 0.0
  %487 = vmatpush1.msra.mxu0 0.0
  %488 = vmatprep.subr.mxu0 0.0
  %489 = vmatpush1.msra.mxu0 0.0
  %490 = vmatprep.subr.mxu0 0.0
  %491 = vmatpush1.msra.mxu0 0.0
  %492 = vmatprep.subr.mxu0 0.0
  %493 = vmatpush1.msra.mxu0 0.0
  %494 = vmatprep.subr.mxu0 0.0
  %495 = vmatpush1.msra.mxu0 0.0
  %496 = vmatprep.subr.mxu0 0.0
  %497 = vmatpush1.msra.mxu0 0.0
  %498 = vmatprep.subr.mxu0 0.0
  %499 = vmatpush1.msra.mxu0 0.0
  %500 = vmatprep.subr.mxu0 0.0
  %501 = vmatpush1.msra.mxu0 0.0
  %502 = vmatprep.subr.mxu0 0.0
  %503 = vmatpush1.msra.mxu0 0.0
  %504 = vmatprep.subr.mxu0 0.0
  %505 = vmatpush1.msra.mxu0 0.0
  %506 = vmatprep.subr.mxu0 0.0
  %507 = vmatpush1.msra.mxu0 0.0
  %508 = vmatprep.subr.mxu0 0.0
  %509 = vmatpush1.msra.mxu0 0.0
  %510 = vmatprep.subr.mxu0 0.0
  %511 = vmatpush1.msra.mxu0 0.0
  %512 = vmatprep.subr.mxu0 0.0
  %513 = vmatpush1.msra.mxu0 0.0
  %514 = vmatprep.subr.mxu0 0.0
  %515 = vmatpush1.msra.mxu0 0.0
  %516 = vmatprep.subr.mxu0 0.0
  %517 = vmatpush1.msra.mxu0 0.0
  %518 = vmatprep.subr.mxu0 0.0
  %519 = vmatpush1.msra.mxu0 0.0
  %520 = vmatprep.subr.mxu0 0.0
  %521 = vmatpush1.msra.mxu0 0.0
  %522 = vmatprep.subr.mxu0 0.0
  %523 = vmatpush1.msra.mxu0 0.0
  %524 = vmatprep.subr.mxu0 0.0
  %525 = vmatpush1.msra.mxu0 0.0
  %526 = vmatprep.subr.mxu0 0.0
  %527 = vmatpush1.msra.mxu0 0.0
  %528 = vmatprep.subr.mxu0 0.0
  %529 = vmatpush1.msra.mxu0 0.0
  %530 = vmatprep.subr.mxu0 0.0
  %531 = vmatpush1.msra.mxu0 0.0
  %532 = vmatprep.subr.mxu0 0.0
  %533 = vmatpush1.msra.mxu0 0.0
  %534 = vmatprep.subr.mxu0 0.0
  %535 = vmatpush1.msra.mxu0 0.0
  %536 = vmatprep.subr.mxu0 0.0
  %537 = vmatpush1.msra.mxu0 0.0
  %538 = vmatprep.subr.mxu0 0.0
  %539 = vmatpush1.msra.mxu0 0.0
  %540 = vmatprep.subr.mxu0 0.0
  %541 = vmatpush1.msra.mxu0 0.0
  %542 = vmatprep.subr.mxu0 0.0
  %543 = vmatpush1.msra.mxu0 0.0
  %544 = vmatprep.subr.mxu0 0.0
  %545 = vmatpush1.msra.mxu0 0.0
  %546 = vmatprep.mubr.f32.mxu0 0.0
  %547 = vmatmul.mubr.f32.gmra.mrb[0].mxu0 %v480
  %v548 = vpop.f32.mrb[0].mxu0
  %v549 = vadd.f32 0.0, %v548
  %v550 = vpop.f32.mrb[0].mxu0
  %551 = vdwg.mxu0
  %v553 = vsel %vm40, %v23, 0
  %555 = vmatprep.subr.mxu0 0.0
  %556 = vmatpush1.msra.mxu0 %v31
  %557 = vmatprep.subr.mxu0 0.0
  %558 = vmatpush1.msra.mxu0 0.0
  %559 = vmatprep.subr.mxu0 0.0
  %560 = vmatpush1.msra.mxu0 0.0
  %561 = vmatprep.subr.mxu0 0.0
  %562 = vmatpush1.msra.mxu0 0.0
  %563 = vmatprep.subr.mxu0 0.0
  %564 = vmatpush1.msra.mxu0 0.0
  %565 = vmatprep.subr.mxu0 0.0
  %566 = vmatpush1.msra.mxu0 0.0
  %567 = vmatprep.subr.mxu0 0.0
  %568 = vmatpush1.msra.mxu0 0.0
  %569 = vmatprep.subr.mxu0 0.0
  %570 = vmatpush1.msra.mxu0 0.0
  %571 = vmatprep.subr.mxu0 0.0
  %572 = vmatpush1.msra.mxu0 0.0
  %573 = vmatprep.subr.mxu0 0.0
  %574 = vmatpush1.msra.mxu0 0.0
  %575 = vmatprep.subr.mxu0 0.0
  %576 = vmatpush1.msra.mxu0 0.0
  %577 = vmatprep.subr.mxu0 0.0
  %578 = vmatpush1.msra.mxu0 0.0
  %579 = vmatprep.subr.mxu0 0.0
  %580 = vmatpush1.msra.mxu0 0.0
  %581 = vmatprep.subr.mxu0 0.0
  %582 = vmatpush1.msra.mxu0 0.0
  %583 = vmatprep.subr.mxu0 0.0
  %584 = vmatpush1.msra.mxu0 0.0
  %585 = vmatprep.subr.mxu0 0.0
  %586 = vmatpush1.msra.mxu0 0.0
  %587 = vmatprep.subr.mxu0 0.0
  %588 = vmatpush1.msra.mxu0 0.0
  %589 = vmatprep.subr.mxu0 0.0
  %590 = vmatpush1.msra.mxu0 0.0
  %591 = vmatprep.subr.mxu0 0.0
  %592 = vmatpush1.msra.mxu0 0.0
  %593 = vmatprep.subr.mxu0 0.0
  %594 = vmatpush1.msra.mxu0 0.0
  %595 = vmatprep.subr.mxu0 0.0
  %596 = vmatpush1.msra.mxu0 0.0
  %597 = vmatprep.subr.mxu0 0.0
  %598 = vmatpush1.msra.mxu0 0.0
  %599 = vmatprep.subr.mxu0 0.0
  %600 = vmatpush1.msra.mxu0 0.0
  %601 = vmatprep.subr.mxu0 0.0
  %602 = vmatpush1.msra.mxu0 0.0
  %603 = vmatprep.subr.mxu0 0.0
  %604 = vmatpush1.msra.mxu0 0.0
  %605 = vmatprep.subr.mxu0 0.0
  %606 = vmatpush1.msra.mxu0 0.0
  %607 = vmatprep.subr.mxu0 0.0
  %608 = vmatpush1.msra.mxu0 0.0
  %609 = vmatprep.subr.mxu0 0.0
  %610 = vmatpush1.msra.mxu0 0.0
  %611 = vmatprep.subr.mxu0 0.0
  %612 = vmatpush1.msra.mxu0 0.0
  %613 = vmatprep.subr.mxu0 0.0
  %614 = vmatpush1.msra.mxu0 0.0
  %615 = vmatprep.subr.mxu0 0.0
  %616 = vmatpush1.msra.mxu0 0.0
  %617 = vmatprep.subr.mxu0 0.0
  %618 = vmatpush1.msra.mxu0 0.0
  %619 = vmatprep.mubr.f32.mxu0 0.0
  %620 = vmatmul.mubr.f32.gmra.mrb[0].mxu0 %v553
  %v621 = vpop.f32.mrb[0].mxu0
  %v622 = vadd.f32 0.0, %v621
  %v623 = vpop.f32.mrb[0].mxu0
  %624 = vdwg.mxu0
  %vm625 = vcmask 25600
  %626 = vst.msk [vmem:[%s3] sm:$0x3] %vm625, %v111
  %627 = vst.msk [vmem:[%s3 + $0x2] sm:$0x3] %vm625, %v184
  %628 = vst.msk [vmem:[%s3 + $0x4] sm:$0x3] %vm625, %v257
  %629 = vst.msk [vmem:[%s3 + $0x6] sm:$0x3] %vm625, %v330
  %630 = vst.msk [vmem:[%s3 + $0x8] sm:$0x3] %vm625, %v403
  %631 = vst.msk [vmem:[%s3 + $0xa] sm:$0x3] %vm625, %v476
  %632 = vst.msk [vmem:[%s3 + $0xc] sm:$0x3] %vm625, %v549
  %633 = vst.msk [vmem:[%s3 + $0xe] sm:$0x3] %vm625, %v622
  %634 = vmatprep.subr.mxu0 0.0
  %635 = vmatpush1.msra.mxu0 %v32
  %636 = vmatprep.subr.mxu0 0.0
  %637 = vmatpush1.msra.mxu0 0.0
  %638 = vmatprep.subr.mxu0 0.0
  %639 = vmatpush1.msra.mxu0 0.0
  %640 = vmatprep.subr.mxu0 0.0
  %641 = vmatpush1.msra.mxu0 0.0
  %642 = vmatprep.subr.mxu0 0.0
  %643 = vmatpush1.msra.mxu0 0.0
  %644 = vmatprep.subr.mxu0 0.0
  %645 = vmatpush1.msra.mxu0 0.0
  %646 = vmatprep.subr.mxu0 0.0
  %647 = vmatpush1.msra.mxu0 0.0
  %648 = vmatprep.subr.mxu0 0.0
  %649 = vmatpush1.msra.mxu0 0.0
  %650 = vmatprep.subr.mxu0 0.0
  %651 = vmatpush1.msra.mxu0 0.0
  %652 = vmatprep.subr.mxu0 0.0
  %653 = vmatpush1.msra.mxu0 0.0
  %654 = vmatprep.subr.mxu0 0.0
  %655 = vmatpush1.msra.mxu0 0.0
  %656 = vmatprep.subr.mxu0 0.0
  %657 = vmatpush1.msra.mxu0 0.0
  %658 = vmatprep.subr.mxu0 0.0
  %659 = vmatpush1.msra.mxu0 0.0
  %660 = vmatprep.subr.mxu0 0.0
  %661 = vmatpush1.msra.mxu0 0.0
  %662 = vmatprep.subr.mxu0 0.0
  %663 = vmatpush1.msra.mxu0 0.0
  %664 = vmatprep.subr.mxu0 0.0
  %665 = vmatpush1.msra.mxu0 0.0
  %666 = vmatprep.subr.mxu0 0.0
  %667 = vmatpush1.msra.mxu0 0.0
  %668 = vmatprep.subr.mxu0 0.0
  %669 = vmatpush1.msra.mxu0 0.0
  %670 = vmatprep.subr.mxu0 0.0
  %671 = vmatpush1.msra.mxu0 0.0
  %672 = vmatprep.subr.mxu0 0.0
  %673 = vmatpush1.msra.mxu0 0.0
  %674 = vmatprep.subr.mxu0 0.0
  %675 = vmatpush1.msra.mxu0 0.0
  %676 = vmatprep.subr.mxu0 0.0
  %677 = vmatpush1.msra.mxu0 0.0
  %678 = vmatprep.subr.mxu0 0.0
  %679 = vmatpush1.msra.mxu0 0.0
  %680 = vmatprep.subr.mxu0 0.0
  %681 = vmatpush1.msra.mxu0 0.0
  %682 = vmatprep.subr.mxu0 0.0
  %683 = vmatpush1.msra.mxu0 0.0
  %684 = vmatprep.subr.mxu0 0.0
  %685 = vmatpush1.msra.mxu0 0.0
  %686 = vmatprep.subr.mxu0 0.0
  %687 = vmatpush1.msra.mxu0 0.0
  %688 = vmatprep.subr.mxu0 0.0
  %689 = vmatpush1.msra.mxu0 0.0
  %690 = vmatprep.subr.mxu0 0.0
  %691 = vmatpush1.msra.mxu0 0.0
  %692 = vmatprep.subr.mxu0 0.0
  %693 = vmatpush1.msra.mxu0 0.0
  %694 = vmatprep.subr.mxu0 0.0
  %695 = vmatpush1.msra.mxu0 0.0
  %696 = vmatprep.subr.mxu0 0.0
  %697 = vmatpush1.msra.mxu0 0.0
  %698 = vmatprep.mubr.f32.mxu0 0.0
  %699 = vmatmul.mubr.f32.gmra.mrb[0].mxu0 %v42
  %v700 = vpop.f32.mrb[0].mxu0
  %v701 = vadd.f32 0.0, %v700
  %v702 = vpop.f32.mrb[0].mxu0
  %703 = vdwg.mxu0
  %704 = vmatprep.subr.mxu0 0.0
  %705 = vmatpush1.msra.mxu0 %v33
  %706 = vmatprep.subr.mxu0 0.0
  %707 = vmatpush1.msra.mxu0 0.0
  %708 = vmatprep.subr.mxu0 0.0
  %709 = vmatpush1.msra.mxu0 0.0
  %710 = vmatprep.subr.mxu0 0.0
  %711 = vmatpush1.msra.mxu0 0.0
  %712 = vmatprep.subr.mxu0 0.0
  %713 = vmatpush1.msra.mxu0 0.0
  %714 = vmatprep.subr.mxu0 0.0
  %715 = vmatpush1.msra.mxu0 0.0
  %716 = vmatprep.subr.mxu0 0.0
  %717 = vmatpush1.msra.mxu0 0.0
  %718 = vmatprep.subr.mxu0 0.0
  %719 = vmatpush1.msra.mxu0 0.0
  %720 = vmatprep.subr.mxu0 0.0
  %721 = vmatpush1.msra.mxu0 0.0
  %722 = vmatprep.subr.mxu0 0.0
  %723 = vmatpush1.msra.mxu0 0.0
  %724 = vmatprep.subr.mxu0 0.0
  %725 = vmatpush1.msra.mxu0 0.0
  %726 = vmatprep.subr.mxu0 0.0
  %727 = vmatpush1.msra.mxu0 0.0
  %728 = vmatprep.subr.mxu0 0.0
  %729 = vmatpush1.msra.mxu0 0.0
  %730 = vmatprep.subr.mxu0 0.0
  %731 = vmatpush1.msra.mxu0 0.0
  %732 = vmatprep.subr.mxu0 0.0
  %733 = vmatpush1.msra.mxu0 0.0
  %734 = vmatprep.subr.mxu0 0.0
  %735 = vmatpush1.msra.mxu0 0.0
  %736 = vmatprep.subr.mxu0 0.0
  %737 = vmatpush1.msra.mxu0 0.0
  %738 = vmatprep.subr.mxu0 0.0
  %739 = vmatpush1.msra.mxu0 0.0
  %740 = vmatprep.subr.mxu0 0.0
  %741 = vmatpush1.msra.mxu0 0.0
  %742 = vmatprep.subr.mxu0 0.0
  %743 = vmatpush1.msra.mxu0 0.0
  %744 = vmatprep.subr.mxu0 0.0
  %745 = vmatpush1.msra.mxu0 0.0
  %746 = vmatprep.subr.mxu0 0.0
  %747 = vmatpush1.msra.mxu0 0.0
  %748 = vmatprep.subr.mxu0 0.0
  %749 = vmatpush1.msra.mxu0 0.0
  %750 = vmatprep.subr.mxu0 0.0
  %751 = vmatpush1.msra.mxu0 0.0
  %752 = vmatprep.subr.mxu0 0.0
  %753 = vmatpush1.msra.mxu0 0.0
  %754 = vmatprep.subr.mxu0 0.0
  %755 = vmatpush1.msra.mxu0 0.0
  %756 = vmatprep.subr.mxu0 0.0
  %757 = vmatpush1.msra.mxu0 0.0
  %758 = vmatprep.subr.mxu0 0.0
  %759 = vmatpush1.msra.mxu0 0.0
  %760 = vmatprep.subr.mxu0 0.0
  %761 = vmatpush1.msra.mxu0 0.0
  %762 = vmatprep.subr.mxu0 0.0
  %763 = vmatpush1.msra.mxu0 0.0
  %764 = vmatprep.subr.mxu0 0.0
  %765 = vmatpush1.msra.mxu0 0.0
  %766 = vmatprep.subr.mxu0 0.0
  %767 = vmatpush1.msra.mxu0 0.0
  %768 = vmatprep.mubr.f32.mxu0 0.0
  %769 = vmatmul.mubr.f32.gmra.mrb[0].mxu0 %v115
  %v770 = vpop.f32.mrb[0].mxu0
  %v771 = vadd.f32 0.0, %v770
  %v772 = vpop.f32.mrb[0].mxu0
  %773 = vdwg.mxu0
  %774 = vmatprep.subr.mxu0 0.0
  %775 = vmatpush1.msra.mxu0 %v34
  %776 = vmatprep.subr.mxu0 0.0
  %777 = vmatpush1.msra.mxu0 0.0
  %778 = vmatprep.subr.mxu0 0.0
  %779 = vmatpush1.msra.mxu0 0.0
  %780 = vmatprep.subr.mxu0 0.0
  %781 = vmatpush1.msra.mxu0 0.0
  %782 = vmatprep.subr.mxu0 0.0
  %783 = vmatpush1.msra.mxu0 0.0
  %784 = vmatprep.subr.mxu0 0.0
  %785 = vmatpush1.msra.mxu0 0.0
  %786 = vmatprep.subr.mxu0 0.0
  %787 = vmatpush1.msra.mxu0 0.0
  %788 = vmatprep.subr.mxu0 0.0
  %789 = vmatpush1.msra.mxu0 0.0
  %790 = vmatprep.subr.mxu0 0.0
  %791 = vmatpush1.msra.mxu0 0.0
  %792 = vmatprep.subr.mxu0 0.0
  %793 = vmatpush1.msra.mxu0 0.0
  %794 = vmatprep.subr.mxu0 0.0
  %795 = vmatpush1.msra.mxu0 0.0
  %796 = vmatprep.subr.mxu0 0.0
  %797 = vmatpush1.msra.mxu0 0.0
  %798 = vmatprep.subr.mxu0 0.0
  %799 = vmatpush1.msra.mxu0 0.0
  %800 = vmatprep.subr.mxu0 0.0
  %801 = vmatpush1.msra.mxu0 0.0
  %802 = vmatprep.subr.mxu0 0.0
  %803 = vmatpush1.msra.mxu0 0.0
  %804 = vmatprep.subr.mxu0 0.0
  %805 = vmatpush1.msra.mxu0 0.0
  %806 = vmatprep.subr.mxu0 0.0
  %807 = vmatpush1.msra.mxu0 0.0
  %808 = vmatprep.subr.mxu0 0.0
  %809 = vmatpush1.msra.mxu0 0.0
  %810 = vmatprep.subr.mxu0 0.0
  %811 = vmatpush1.msra.mxu0 0.0
  %812 = vmatprep.subr.mxu0 0.0
  %813 = vmatpush1.msra.mxu0 0.0
  %814 = vmatprep.subr.mxu0 0.0
  %815 = vmatpush1.msra.mxu0 0.0
  %816 = vmatprep.subr.mxu0 0.0
  %817 = vmatpush1.msra.mxu0 0.0
  %818 = vmatprep.subr.mxu0 0.0
  %819 = vmatpush1.msra.mxu0 0.0
  %820 = vmatprep.subr.mxu0 0.0
  %821 = vmatpush1.msra.mxu0 0.0
  %822 = vmatprep.subr.mxu0 0.0
  %823 = vmatpush1.msra.mxu0 0.0
  %824 = vmatprep.subr.mxu0 0.0
  %825 = vmatpush1.msra.mxu0 0.0
  %826 = vmatprep.subr.mxu0 0.0
  %827 = vmatpush1.msra.mxu0 0.0
  %828 = vmatprep.subr.mxu0 0.0
  %829 = vmatpush1.msra.mxu0 0.0
  %830 = vmatprep.subr.mxu0 0.0
  %831 = vmatpush1.msra.mxu0 0.0
  %832 = vmatprep.subr.mxu0 0.0
  %833 = vmatpush1.msra.mxu0 0.0
  %834 = vmatprep.subr.mxu0 0.0
  %835 = vmatpush1.msra.mxu0 0.0
  %836 = vmatprep.subr.mxu0 0.0
  %837 = vmatpush1.msra.mxu0 0.0
  %838 = vmatprep.mubr.f32.mxu0 0.0
  %839 = vmatmul.mubr.f32.gmra.mrb[0].mxu0 %v188
  %v840 = vpop.f32.mrb[0].mxu0
  %v841 = vadd.f32 0.0, %v840
  %v842 = vpop.f32.mrb[0].mxu0
  %843 = vdwg.mxu0
  %844 = vmatprep.subr.mxu0 0.0
  %845 = vmatpush1.msra.mxu0 %v35
  %846 = vmatprep.subr.mxu0 0.0
  %847 = vmatpush1.msra.mxu0 0.0
  %848 = vmatprep.subr.mxu0 0.0
  %849 = vmatpush1.msra.mxu0 0.0
  %850 = vmatprep.subr.mxu0 0.0
  %851 = vmatpush1.msra.mxu0 0.0
  %852 = vmatprep.subr.mxu0 0.0
  %853 = vmatpush1.msra.mxu0 0.0
  %854 = vmatprep.subr.mxu0 0.0
  %855 = vmatpush1.msra.mxu0 0.0
  %856 = vmatprep.subr.mxu0 0.0
  %857 = vmatpush1.msra.mxu0 0.0
  %858 = vmatprep.subr.mxu0 0.0
  %859 = vmatpush1.msra.mxu0 0.0
  %860 = vmatprep.subr.mxu0 0.0
  %861 = vmatpush1.msra.mxu0 0.0
  %862 = vmatprep.subr.mxu0 0.0
  %863 = vmatpush1.msra.mxu0 0.0
  %864 = vmatprep.subr.mxu0 0.0
  %865 = vmatpush1.msra.mxu0 0.0
  %866 = vmatprep.subr.mxu0 0.0
  %867 = vmatpush1.msra.mxu0 0.0
  %868 = vmatprep.subr.mxu0 0.0
  %869 = vmatpush1.msra.mxu0 0.0
  %870 = vmatprep.subr.mxu0 0.0
  %871 = vmatpush1.msra.mxu0 0.0
  %872 = vmatprep.subr.mxu0 0.0
  %873 = vmatpush1.msra.mxu0 0.0
  %874 = vmatprep.subr.mxu0 0.0
  %875 = vmatpush1.msra.mxu0 0.0
  %876 = vmatprep.subr.mxu0 0.0
  %877 = vmatpush1.msra.mxu0 0.0
  %878 = vmatprep.subr.mxu0 0.0
  %879 = vmatpush1.msra.mxu0 0.0
  %880 = vmatprep.subr.mxu0 0.0
  %881 = vmatpush1.msra.mxu0 0.0
  %882 = vmatprep.subr.mxu0 0.0
  %883 = vmatpush1.msra.mxu0 0.0
  %884 = vmatprep.subr.mxu0 0.0
  %885 = vmatpush1.msra.mxu0 0.0
  %886 = vmatprep.subr.mxu0 0.0
  %887 = vmatpush1.msra.mxu0 0.0
  %888 = vmatprep.subr.mxu0 0.0
  %889 = vmatpush1.msra.mxu0 0.0
  %890 = vmatprep.subr.mxu0 0.0
  %891 = vmatpush1.msra.mxu0 0.0
  %892 = vmatprep.subr.mxu0 0.0
  %893 = vmatpush1.msra.mxu0 0.0
  %894 = vmatprep.subr.mxu0 0.0
  %895 = vmatpush1.msra.mxu0 0.0
  %896 = vmatprep.subr.mxu0 0.0
  %897 = vmatpush1.msra.mxu0 0.0
  %898 = vmatprep.subr.mxu0 0.0
  %899 = vmatpush1.msra.mxu0 0.0
  %900 = vmatprep.subr.mxu0 0.0
  %901 = vmatpush1.msra.mxu0 0.0
  %902 = vmatprep.subr.mxu0 0.0
  %903 = vmatpush1.msra.mxu0 0.0
  %904 = vmatprep.subr.mxu0 0.0
  %905 = vmatpush1.msra.mxu0 0.0
  %906 = vmatprep.subr.mxu0 0.0
  %907 = vmatpush1.msra.mxu0 0.0
  %908 = vmatprep.mubr.f32.mxu0 0.0
  %909 = vmatmul.mubr.f32.gmra.mrb[0].mxu0 %v261
  %v910 = vpop.f32.mrb[0].mxu0
  %v911 = vadd.f32 0.0, %v910
  %v912 = vpop.f32.mrb[0].mxu0
  %913 = vdwg.mxu0
  %914 = vmatprep.subr.mxu0 0.0
  %915 = vmatpush1.msra.mxu0 %v36
  %916 = vmatprep.subr.mxu0 0.0
  %917 = vmatpush1.msra.mxu0 0.0
  %918 = vmatprep.subr.mxu0 0.0
  %919 = vmatpush1.msra.mxu0 0.0
  %920 = vmatprep.subr.mxu0 0.0
  %921 = vmatpush1.msra.mxu0 0.0
  %922 = vmatprep.subr.mxu0 0.0
  %923 = vmatpush1.msra.mxu0 0.0
  %924 = vmatprep.subr.mxu0 0.0
  %925 = vmatpush1.msra.mxu0 0.0
  %926 = vmatprep.subr.mxu0 0.0
  %927 = vmatpush1.msra.mxu0 0.0
  %928 = vmatprep.subr.mxu0 0.0
  %929 = vmatpush1.msra.mxu0 0.0
  %930 = vmatprep.subr.mxu0 0.0
  %931 = vmatpush1.msra.mxu0 0.0
  %932 = vmatprep.subr.mxu0 0.0
  %933 = vmatpush1.msra.mxu0 0.0
  %934 = vmatprep.subr.mxu0 0.0
  %935 = vmatpush1.msra.mxu0 0.0
  %936 = vmatprep.subr.mxu0 0.0
  %937 = vmatpush1.msra.mxu0 0.0
  %938 = vmatprep.subr.mxu0 0.0
  %939 = vmatpush1.msra.mxu0 0.0
  %940 = vmatprep.subr.mxu0 0.0
  %941 = vmatpush1.msra.mxu0 0.0
  %942 = vmatprep.subr.mxu0 0.0
  %943 = vmatpush1.msra.mxu0 0.0
  %944 = vmatprep.subr.mxu0 0.0
  %945 = vmatpush1.msra.mxu0 0.0
  %946 = vmatprep.subr.mxu0 0.0
  %947 = vmatpush1.msra.mxu0 0.0
  %948 = vmatprep.subr.mxu0 0.0
  %949 = vmatpush1.msra.mxu0 0.0
  %950 = vmatprep.subr.mxu0 0.0
  %951 = vmatpush1.msra.mxu0 0.0
  %952 = vmatprep.subr.mxu0 0.0
  %953 = vmatpush1.msra.mxu0 0.0
  %954 = vmatprep.subr.mxu0 0.0
  %955 = vmatpush1.msra.mxu0 0.0
  %956 = vmatprep.subr.mxu0 0.0
  %957 = vmatpush1.msra.mxu0 0.0
  %958 = vmatprep.subr.mxu0 0.0
  %959 = vmatpush1.msra.mxu0 0.0
  %960 = vmatprep.subr.mxu0 0.0
  %961 = vmatpush1.msra.mxu0 0.0
  %962 = vmatprep.subr.mxu0 0.0
  %963 = vmatpush1.msra.mxu0 0.0
  %964 = vmatprep.subr.mxu0 0.0
  %965 = vmatpush1.msra.mxu0 0.0
  %966 = vmatprep.subr.mxu0 0.0
  %967 = vmatpush1.msra.mxu0 0.0
  %968 = vmatprep.subr.mxu0 0.0
  %969 = vmatpush1.msra.mxu0 0.0
  %970 = vmatprep.subr.mxu0 0.0
  %971 = vmatpush1.msra.mxu0 0.0
  %972 = vmatprep.subr.mxu0 0.0
  %973 = vmatpush1.msra.mxu0 0.0
  %974 = vmatprep.subr.mxu0 0.0
  %975 = vmatpush1.msra.mxu0 0.0
  %976 = vmatprep.subr.mxu0 0.0
  %977 = vmatpush1.msra.mxu0 0.0
  %978 = vmatprep.mubr.f32.mxu0 0.0
  %979 = vmatmul.mubr.f32.gmra.mrb[0].mxu0 %v334
  %v980 = vpop.f32.mrb[0].mxu0
  %v981 = vadd.f32 0.0, %v980
  %v982 = vpop.f32.mrb[0].mxu0
  %983 = vdwg.mxu0
  %984 = vmatprep.subr.mxu0 0.0
  %985 = vmatpush1.msra.mxu0 %v37
  %986 = vmatprep.subr.mxu0 0.0
  %987 = vmatpush1.msra.mxu0 0.0
  %988 = vmatprep.subr.mxu0 0.0
  %989 = vmatpush1.msra.mxu0 0.0
  %990 = vmatprep.subr.mxu0 0.0
  %991 = vmatpush1.msra.mxu0 0.0
  %992 = vmatprep.subr.mxu0 0.0
  %993 = vmatpush1.msra.mxu0 0.0
  %994 = vmatprep.subr.mxu0 0.0
  %995 = vmatpush1.msra.mxu0 0.0
  %996 = vmatprep.subr.mxu0 0.0
  %997 = vmatpush1.msra.mxu0 0.0
  %998 = vmatprep.subr.mxu0 0.0
  %999 = vmatpush1.msra.mxu0 0.0
  %1000 = vmatprep.subr.mxu0 0.0
  %1001 = vmatpush1.msra.mxu0 0.0
  %1002 = vmatprep.subr.mxu0 0.0
  %1003 = vmatpush1.msra.mxu0 0.0
  %1004 = vmatprep.subr.mxu0 0.0
  %1005 = vmatpush1.msra.mxu0 0.0
  %1006 = vmatprep.subr.mxu0 0.0
  %1007 = vmatpush1.msra.mxu0 0.0
  %1008 = vmatprep.subr.mxu0 0.0
  %1009 = vmatpush1.msra.mxu0 0.0
  %1010 = vmatprep.subr.mxu0 0.0
  %1011 = vmatpush1.msra.mxu0 0.0
  %1012 = vmatprep.subr.mxu0 0.0
  %1013 = vmatpush1.msra.mxu0 0.0
  %1014 = vmatprep.subr.mxu0 0.0
  %1015 = vmatpush1.msra.mxu0 0.0
  %1016 = vmatprep.subr.mxu0 0.0
  %1017 = vmatpush1.msra.mxu0 0.0
  %1018 = vmatprep.subr.mxu0 0.0
  %1019 = vmatpush1.msra.mxu0 0.0
  %1020 = vmatprep.subr.mxu0 0.0
  %1021 = vmatpush1.msra.mxu0 0.0
  %1022 = vmatprep.subr.mxu0 0.0
  %1023 = vmatpush1.msra.mxu0 0.0
  %1024 = vmatprep.subr.mxu0 0.0
  %1025 = vmatpush1.msra.mxu0 0.0
  %1026 = vmatprep.subr.mxu0 0.0
  %1027 = vmatpush1.msra.mxu0 0.0
  %1028 = vmatprep.subr.mxu0 0.0
  %1029 = vmatpush1.msra.mxu0 0.0
  %1030 = vmatprep.subr.mxu0 0.0
  %1031 = vmatpush1.msra.mxu0 0.0
  %1032 = vmatprep.subr.mxu0 0.0
  %1033 = vmatpush1.msra.mxu0 0.0
  %1034 = vmatprep.subr.mxu0 0.0
  %1035 = vmatpush1.msra.mxu0 0.0
  %1036 = vmatprep.subr.mxu0 0.0
  %1037 = vmatpush1.msra.mxu0 0.0
  %1038 = vmatprep.subr.mxu0 0.0
  %1039 = vmatpush1.msra.mxu0 0.0
  %1040 = vmatprep.subr.mxu0 0.0
  %1041 = vmatpush1.msra.mxu0 0.0
  %1042 = vmatprep.subr.mxu0 0.0
  %1043 = vmatpush1.msra.mxu0 0.0
  %1044 = vmatprep.subr.mxu0 0.0
  %1045 = vmatpush1.msra.mxu0 0.0
  %1046 = vmatprep.subr.mxu0 0.0
  %1047 = vmatpush1.msra.mxu0 0.0
  %1048 = vmatprep.mubr.f32.mxu0 0.0
  %1049 = vmatmul.mubr.f32.gmra.mrb[0].mxu0 %v407
  %v1050 = vpop.f32.mrb[0].mxu0
  %v1051 = vadd.f32 0.0, %v1050
  %v1052 = vpop.f32.mrb[0].mxu0
  %1053 = vdwg.mxu0
  %1054 = vmatprep.subr.mxu0 0.0
  %1055 = vmatpush1.msra.mxu0 %v38
  %1056 = vmatprep.subr.mxu0 0.0
  %1057 = vmatpush1.msra.mxu0 0.0
  %1058 = vmatprep.subr.mxu0 0.0
  %1059 = vmatpush1.msra.mxu0 0.0
  %1060 = vmatprep.subr.mxu0 0.0
  %1061 = vmatpush1.msra.mxu0 0.0
  %1062 = vmatprep.subr.mxu0 0.0
  %1063 = vmatpush1.msra.mxu0 0.0
  %1064 = vmatprep.subr.mxu0 0.0
  %1065 = vmatpush1.msra.mxu0 0.0
  %1066 = vmatprep.subr.mxu0 0.0
  %1067 = vmatpush1.msra.mxu0 0.0
  %1068 = vmatprep.subr.mxu0 0.0
  %1069 = vmatpush1.msra.mxu0 0.0
  %1070 = vmatprep.subr.mxu0 0.0
  %1071 = vmatpush1.msra.mxu0 0.0
  %1072 = vmatprep.subr.mxu0 0.0
  %1073 = vmatpush1.msra.mxu0 0.0
  %1074 = vmatprep.subr.mxu0 0.0
  %1075 = vmatpush1.msra.mxu0 0.0
  %1076 = vmatprep.subr.mxu0 0.0
  %1077 = vmatpush1.msra.mxu0 0.0
  %1078 = vmatprep.subr.mxu0 0.0
  %1079 = vmatpush1.msra.mxu0 0.0
  %1080 = vmatprep.subr.mxu0 0.0
  %1081 = vmatpush1.msra.mxu0 0.0
  %1082 = vmatprep.subr.mxu0 0.0
  %1083 = vmatpush1.msra.mxu0 0.0
  %1084 = vmatprep.subr.mxu0 0.0
  %1085 = vmatpush1.msra.mxu0 0.0
  %1086 = vmatprep.subr.mxu0 0.0
  %1087 = vmatpush1.msra.mxu0 0.0
  %1088 = vmatprep.subr.mxu0 0.0
  %1089 = vmatpush1.msra.mxu0 0.0
  %1090 = vmatprep.subr.mxu0 0.0
  %1091 = vmatpush1.msra.mxu0 0.0
  %1092 = vmatprep.subr.mxu0 0.0
  %1093 = vmatpush1.msra.mxu0 0.0
  %1094 = vmatprep.subr.mxu0 0.0
  %1095 = vmatpush1.msra.mxu0 0.0
  %1096 = vmatprep.subr.mxu0 0.0
  %1097 = vmatpush1.msra.mxu0 0.0
  %1098 = vmatprep.subr.mxu0 0.0
  %1099 = vmatpush1.msra.mxu0 0.0
  %1100 = vmatprep.subr.mxu0 0.0
  %1101 = vmatpush1.msra.mxu0 0.0
  %1102 = vmatprep.subr.mxu0 0.0
  %1103 = vmatpush1.msra.mxu0 0.0
  %1104 = vmatprep.subr.mxu0 0.0
  %1105 = vmatpush1.msra.mxu0 0.0
  %1106 = vmatprep.subr.mxu0 0.0
  %1107 = vmatpush1.msra.mxu0 0.0
  %1108 = vmatprep.subr.mxu0 0.0
  %1109 = vmatpush1.msra.mxu0 0.0
  %1110 = vmatprep.subr.mxu0 0.0
  %1111 = vmatpush1.msra.mxu0 0.0
  %1112 = vmatprep.subr.mxu0 0.0
  %1113 = vmatpush1.msra.mxu0 0.0
  %1114 = vmatprep.subr.mxu0 0.0
  %1115 = vmatpush1.msra.mxu0 0.0
  %1116 = vmatprep.subr.mxu0 0.0
  %1117 = vmatpush1.msra.mxu0 0.0
  %1118 = vmatprep.mubr.f32.mxu0 0.0
  %1119 = vmatmul.mubr.f32.gmra.mrb[0].mxu0 %v480
  %v1120 = vpop.f32.mrb[0].mxu0
  %v1121 = vadd.f32 0.0, %v1120
  %v1122 = vpop.f32.mrb[0].mxu0
  %1123 = vdwg.mxu0
  %1124 = vmatprep.subr.mxu0 0.0
  %1125 = vmatpush1.msra.mxu0 %v39
  %1126 = vmatprep.subr.mxu0 0.0
  %1127 = vmatpush1.msra.mxu0 0.0
  %1128 = vmatprep.subr.mxu0 0.0
  %1129 = vmatpush1.msra.mxu0 0.0
  %1130 = vmatprep.subr.mxu0 0.0
  %1131 = vmatpush1.msra.mxu0 0.0
  %1132 = vmatprep.subr.mxu0 0.0
  %1133 = vmatpush1.msra.mxu0 0.0
  %1134 = vmatprep.subr.mxu0 0.0
  %1135 = vmatpush1.msra.mxu0 0.0
  %1136 = vmatprep.subr.mxu0 0.0
  %1137 = vmatpush1.msra.mxu0 0.0
  %1138 = vmatprep.subr.mxu0 0.0
  %1139 = vmatpush1.msra.mxu0 0.0
  %1140 = vmatprep.subr.mxu0 0.0
  %1141 = vmatpush1.msra.mxu0 0.0
  %1142 = vmatprep.subr.mxu0 0.0
  %1143 = vmatpush1.msra.mxu0 0.0
  %1144 = vmatprep.subr.mxu0 0.0
  %1145 = vmatpush1.msra.mxu0 0.0
  %1146 = vmatprep.subr.mxu0 0.0
  %1147 = vmatpush1.msra.mxu0 0.0
  %1148 = vmatprep.subr.mxu0 0.0
  %1149 = vmatpush1.msra.mxu0 0.0
  %1150 = vmatprep.subr.mxu0 0.0
  %1151 = vmatpush1.msra.mxu0 0.0
  %1152 = vmatprep.subr.mxu0 0.0
  %1153 = vmatpush1.msra.mxu0 0.0
  %1154 = vmatprep.subr.mxu0 0.0
  %1155 = vmatpush1.msra.mxu0 0.0
  %1156 = vmatprep.subr.mxu0 0.0
  %1157 = vmatpush1.msra.mxu0 0.0
  %1158 = vmatprep.subr.mxu0 0.0
  %1159 = vmatpush1.msra.mxu0 0.0
  %1160 = vmatprep.subr.mxu0 0.0
  %1161 = vmatpush1.msra.mxu0 0.0
  %1162 = vmatprep.subr.mxu0 0.0
  %1163 = vmatpush1.msra.mxu0 0.0
  %1164 = vmatprep.subr.mxu0 0.0
  %1165 = vmatpush1.msra.mxu0 0.0
  %1166 = vmatprep.subr.mxu0 0.0
  %1167 = vmatpush1.msra.mxu0 0.0
  %1168 = vmatprep.subr.mxu0 0.0
  %1169 = vmatpush1.msra.mxu0 0.0
  %1170 = vmatprep.subr.mxu0 0.0
  %1171 = vmatpush1.msra.mxu0 0.0
  %1172 = vmatprep.subr.mxu0 0.0
  %1173 = vmatpush1.msra.mxu0 0.0
  %1174 = vmatprep.subr.mxu0 0.0
  %1175 = vmatpush1.msra.mxu0 0.0
  %1176 = vmatprep.subr.mxu0 0.0
  %1177 = vmatpush1.msra.mxu0 0.0
  %1178 = vmatprep.subr.mxu0 0.0
  %1179 = vmatpush1.msra.mxu0 0.0
  %1180 = vmatprep.subr.mxu0 0.0
  %1181 = vmatpush1.msra.mxu0 0.0
  %1182 = vmatprep.subr.mxu0 0.0
  %1183 = vmatpush1.msra.mxu0 0.0
  %1184 = vmatprep.subr.mxu0 0.0
  %1185 = vmatpush1.msra.mxu0 0.0
  %1186 = vmatprep.subr.mxu0 0.0
  %1187 = vmatpush1.msra.mxu0 0.0
  %1188 = vmatprep.mubr.f32.mxu0 0.0
  %1189 = vmatmul.mubr.f32.gmra.mrb[0].mxu0 %v553
  %v1190 = vpop.f32.mrb[0].mxu0
  %v1191 = vadd.f32 0.0, %v1190
  %v1192 = vpop.f32.mrb[0].mxu0
  %1193 = vdwg.mxu0
  %1194 = vst.msk [vmem:[%s4] sm:$0x3] %vm625, %v701
  %1195 = vst.msk [vmem:[%s4 + $0x2] sm:$0x3] %vm625, %v771
  %1196 = vst.msk [vmem:[%s4 + $0x4] sm:$0x3] %vm625, %v841
  %1197 = vst.msk [vmem:[%s4 + $0x6] sm:$0x3] %vm625, %v911
  %1198 = vst.msk [vmem:[%s4 + $0x8] sm:$0x3] %vm625, %v981
  %1199 = vst.msk [vmem:[%s4 + $0xa] sm:$0x3] %vm625, %v1051
  %1200 = vst.msk [vmem:[%s4 + $0xc] sm:$0x3] %vm625, %v1121
  %1201 = vst.msk [vmem:[%s4 + $0xe] sm:$0x3] %vm625, %v1191
  // Predicated region
  $region14: #{tpu_custom_call.1} parent=0 // pred_check
    _
  $region15: #{tpu_custom_call.1} parent=0 // pred_check_branch
    %1203 = sbr.rel (0) target = $region17
  $region16: #{tpu_custom_call.1} parent=0 // pred_region
    _
  $region17: #{tpu_custom_call.1} parent=0 // pred_fallthru
    _
  // Predicated region
  $region18: #{tpu_custom_call.1} parent=0 // pred_check
    _
  $region19: #{tpu_custom_call.1} parent=0 // pred_check_branch
    %1205 = sbr.rel (0) target = $region21
  $region20: #{tpu_custom_call.1} parent=0 // pred_region
    _
  $region21: #{tpu_custom_call.1} parent=0 // pred_fallthru
    _
  // Predicated region
  $region22: #{tpu_custom_call.1} parent=0 // pred_check
    _
  $region23: #{tpu_custom_call.1} parent=0 // pred_check_branch
    %1207 = sbr.rel (0) target = $region25
  $region24: #{tpu_custom_call.1} parent=0 // pred_region
    _
  $region25: #{tpu_custom_call.1} parent=0 // pred_fallthru
    _
  // Predicated region
  $region26: #{tpu_custom_call.1} parent=0 // pred_check
    _
  $region27: #{tpu_custom_call.1} parent=0 // pred_check_branch
    %1209 = sbr.rel (0) target = $region29
  $region28: #{tpu_custom_call.1} parent=0 // pred_region
    _
  $region29: #{tpu_custom_call.1} parent=0 // pred_fallthru
    _

</llo_original>
